<compile_context>
chip_gen: v5e
topology: v5e:2x2
jax: 0.10.0
libtpu: 0.0.40
codegen_flags: <defaults>
</compile_context>

<pallas_src>
from math import floor

import numpy as np
import jax
import jax.numpy as jnp
from jax.experimental import pallas as pl
from jax.experimental.pallas import tpu as pltpu


def _round_up(x, m):
    return ((x + m - 1) // m) * m


def _make_spectral_loss_kernel(N, KH, W, NR_pad, NC_pad, ratio):
    """Kernel body with all static shape constants closed over.

    One grid step == one spectral band:
      conv[n, ri, ci] = sum_i  img[n, 2+ratio*ri+i, :] @ bmat[band, i, :, ci]
      partial(band)   = sum    |conv - labels_strided| * |mask_strided|
    The banded tap matrix applies the KW column taps AND the column striding in a
    single lane-dense MXU matmul per row tap.
    """

    def kernel(bmat_ref, out_ref, lab_ref, wgt_ref, loss_ref):
        lab = lab_ref[...].astype(jnp.float32)      # (N, NR_pad, NC_pad)
        wgt = wgt_ref[...]                          # (NR_pad, NC_pad), 0 on padding

        conv = jnp.zeros((N * NR_pad, NC_pad), jnp.float32)
        for i in range(KH):
            # rows[n, ri, :] = img[n, 2 + ratio*ri + i, :]   (strided sublane read;
            # replaces the old one-hot selection matmul)
            rows = out_ref[:, pl.ds(2 + i, NR_pad, stride=ratio), :]
            rows = rows.reshape(N * NR_pad, W).astype(jnp.bfloat16)
            conv = conv + jnp.dot(rows, bmat_ref[i],
                                  preferred_element_type=jnp.float32)
        conv = conv.reshape(N, NR_pad, NC_pad)

        partial = jnp.sum(jnp.abs(conv - lab) * wgt)       # padded positions: wgt==0
        # Lane-dense scalar writeback: broadcast the partial over a full 128-lane slab.
        loss_ref[...] = jnp.full((1, 128), partial, jnp.float32)

    return kernel


class SpectralLossNocorrPallas:
    """JAX/Pallas port of the PyTorch SpectralLossNocorr module (forward only)."""

    LANE = 128      # pad strided conv columns to a multiple of this (v6e: 256 also fine)
    SUBLANE = 8     # pad strided conv rows to a multiple of this

    def __init__(self, mtf, net_crop, pan_shape, ratio, mask=None):
        kernel = mtf[0]                              # (KH, KW, nbands)
        self.nbands = int(kernel.shape[-1])
        self.net_scope = net_crop
        self.ratio = int(ratio)
        self.MTF_r = 2
        self.MTF_c = 2
        self.pad = floor((kernel.shape[0] - 1) / 2)
        k = np.moveaxis(np.asarray(kernel, np.float32), -1, 0)   # (nbands, KH, KW)
        self.kernel_np = k
        self.KH, self.KW = int(k.shape[1]), int(k.shape[2])
        # labels[:, :, pad:-pad, pad:-pad] only lines up with the 'valid' conv output
        # for odd kernel sizes (same as the PyTorch module in practice).
        assert self.KH % 2 == 1 and self.KW % 2 == 1
        mh = pan_shape[-2] - (self.net_scope + self.pad) * 2
        mw = pan_shape[-1] - (self.net_scope + self.pad) * 2
        if mask is not None:
            self.mask = jnp.asarray(mask, jnp.float32)
        else:
            self.mask = jnp.ones((1, self.nbands, mh, mw), jnp.float32)
        self._bmat_cache = {}

    def _tap_matrix(self, W, NC, NC_pad):
        """Banded column-tap matrix (bf16): bmat[c, i, 2+ratio*ci+j, ci] = k[c, i, j]."""
        key = (W, NC, NC_pad)
        if key in self._bmat_cache:
            return self._bmat_cache[key]
        C, KH, KW, R = self.nbands, self.KH, self.KW, self.ratio
        bmat = np.zeros((C, KH, W, NC_pad), np.float32)
        for c in range(C):
            for i in range(KH):
                for ci in range(NC):
                    c0 = 2 + R * ci
                    bmat[c, i, c0:c0 + KW, ci] = self.kernel_np[c, i, :]
        bmat_bf16 = jnp.asarray(bmat).astype(jnp.bfloat16)     # bf16 MXU operand
        self._bmat_cache[key] = bmat_bf16
        return bmat_bf16

    def __call__(self, outputs, labels):
        N, C, H, W = outputs.shape
        KH, KW, PAD, R = self.KH, self.KW, self.pad, self.ratio
        HO, WO = H - KH + 1, W - KW + 1
        assert self.mask.shape == (1, C, HO, WO)
        NR = len(range(2, HO, R))     # strided output rows 2, 2+ratio, ...
        NC = len(range(2, WO, R))     # strided output cols 2, 2+ratio, ...
        NR_pad = _round_up(NR, self.SUBLANE)
        NC_pad = _round_up(NC, self.LANE)
        # Pad image rows so strided reads for the (zero-weighted) padded output rows
        # stay in bounds.
        H_pad = _round_up(max(H, 2 + (KH - 1) + R * (NR_pad - 1) + 1), self.SUBLANE)

        bmat = self._tap_matrix(W, NC, NC_pad)

        outputs_p = jnp.pad(outputs, ((0, 0), (0, 0), (0, H_pad - H), (0, 0)))

        # Pre-strided labels / |mask|: only 1/ratio^2 of positions contribute.
        labels_s = labels[:, :, PAD + 2:PAD + HO:R, PAD + 2:PAD + WO:R]
        labels_sp = jnp.pad(labels_s.astype(jnp.float32),
                            ((0, 0), (0, 0), (0, NR_pad - NR), (0, NC_pad - NC)))
        mask_s = self.mask[:, :, 2::R, 2::R]
        wgt_sp = jnp.pad(jnp.abs(mask_s).astype(jnp.float32),
                         ((0, 0), (0, 0), (0, NR_pad - NR), (0, NC_pad - NC)))
        # sum(W_) of the reference (mask is broadcast over the batch dimension).
        sum_w = (N * jnp.sum(mask_s)).astype(jnp.float32)

        kern = _make_spectral_loss_kernel(N, KH, W, NR_pad, NC_pad, R)

        flops = 2 * C * KH * (N * NR_pad) * W * NC_pad
        bytes_accessed = int(outputs_p.size * outputs_p.dtype.itemsize
                             + labels_sp.size * 4 + wgt_sp.size * 4
                             + bmat.size * 2 + C * 128 * 4)

        # TODO(synk): for very large planes (N*H_pad*W f32 >> default scoped VMEM),
        # split the batch onto a second grid axis (per-(c,n) partials) and/or set
        # pltpu.CompilerParams(vmem_limit_bytes=...).
        partials = pl.pallas_call(
            kern,
            out_shape=jax.ShapeDtypeStruct((1, C * 128), jnp.float32),
            grid_spec=pltpu.PrefetchScalarGridSpec(
                num_scalar_prefetch=0,
                grid=(C,),                                     # one step per band
                in_specs=[
                    pl.BlockSpec((None, KH, W, NC_pad), lambda c: (c, 0, 0, 0)),         # bmat
                    pl.BlockSpec((N, None, H_pad, W), lambda c: (0, c, 0, 0)),           # outputs
                    pl.BlockSpec((N, None, NR_pad, NC_pad), lambda c: (0, c, 0, 0)),     # labels_s
                    pl.BlockSpec((None, None, NR_pad, NC_pad), lambda c: (0, c, 0, 0)),  # |mask|_s
                ],
                out_specs=pl.BlockSpec((1, 128), lambda c: (0, c)),
            ),
            compiler_params=pltpu.CompilerParams(
                dimension_semantics=("parallel",)),             # shards bands on v7x
            cost_estimate=pl.CostEstimate(flops=flops, transcendentals=0,
                                          bytes_accessed=bytes_accessed),
        )(bmat, outputs_p, labels_sp, wgt_sp)

        raw = jnp.sum(partials.reshape(C, 128)[:, 0])
        # sum|x*W/s - y*W/s| == sum(|x - y| * |W|) / |s|: normalise once at the end.
        return raw / jnp.abs(sum_w)


def _numpy_reference(outputs, labels, kernel_chw, mask, ratio, pad):
    """Direct NumPy mirror of the PyTorch forward (for correctness checking)."""
    outputs = np.asarray(outputs, np.float64)
    labels = np.asarray(labels, np.float64)
    mask = np.asarray(mask, np.float64)
    kernel_chw = np.asarray(kernel_chw, np.float64)
    N, C, H, W = outputs.shape
    KH, KW = kernel_chw.shape[1:]
    HO, WO = H - KH + 1, W - KW + 1
    x = np.zeros((N, C, HO, WO), np.float64)
    for n in range(N):
        for c in range(C):
            for i in range(HO):
                for j in range(WO):
                    x[n, c, i, j] = np.sum(outputs[n, c, i:i + KH, j:j + KW]
                                           * kernel_chw[c])
    lab = labels[:, :, pad:-pad, pad:-pad]
    y = np.zeros_like(x)
    Wm = np.zeros_like(x)
    for b in range(C):
        y[:, b, 2::ratio, 2::ratio] = lab[:, b, 2::ratio, 2::ratio]
        Wm[:, b, 2::ratio, 2::ratio] = mask[:, b, 2::ratio, 2::ratio]
    Wm = Wm / Wm.sum()
    return np.abs(x * Wm - y * Wm).sum()


if __name__ == "__main__":
    # deterministic synthetic MTF: per-band Gaussian-ish 7x7 kernels, shape (KH, KW, nbands)
    nbands, KH, KW = 4, 7, 7
    yy, xx = np.mgrid[-(KH // 2):KH // 2 + 1, -(KW // 2):KW // 2 + 1]
    mtf_kernel = np.stack(
        [np.exp(-(xx ** 2 + yy ** 2) / (2.0 * (0.8 + 0.3 * b) ** 2)) for b in range(nbands)],
        axis=-1).astype(np.float32)
    mtf_kernel /= mtf_kernel.sum(axis=(0, 1), keepdims=True)
    mtf = (mtf_kernel,)

    batch, pan_h, pan_w = 2, 32, 32
    net_crop, ratio = 0, 4
    pan_shape = (1, 1, pan_h, pan_w)

    module = SpectralLossNocorrPallas(mtf, net_crop, pan_shape, ratio)

    key = jax.random.PRNGKey(0)
    k1, k2 = jax.random.split(key)
    outputs = jax.random.normal(k1, (batch, nbands, pan_h, pan_w), jnp.float32)
    labels = jax.random.normal(k2, (batch, nbands, pan_h, pan_w), jnp.float32)

    loss = module(outputs, labels)
    loss = jax.block_until_ready(loss)

    ref = _numpy_reference(outputs, labels, np.moveaxis(mtf_kernel, -1, 0),
                           np.asarray(module.mask), ratio, module.pad)
    # bf16 MXU operands (f32 accumulation) => slightly looser tolerance than pure f32.
    assert np.allclose(float(loss), float(ref), rtol=2e-3, atol=1e-3), (float(loss), float(ref))

    print("KERNEL_OK")
</pallas_src>

<mosaic_0001>
module attributes {stable_mosaic.version = 11 : i64} {
  func.func @kernel(%arg0: i32, %arg1: memref<1x7x32x128xbf16, #tpu.memory_space<vmem>>, %arg2: memref<2x1x40x32xf32, #tpu.memory_space<vmem>>, %arg3: memref<2x1x8x128xf32, #tpu.memory_space<vmem>>, %arg4: memref<1x1x8x128xf32, #tpu.memory_space<vmem>>, %arg5: memref<1x128xf32, #tpu.memory_space<vmem>>) attributes {dimension_semantics = [#tpu.dimension_semantics<parallel>], iteration_bounds = array<i64: 4>, scalar_prefetch = 0 : i64, scratch_operands = 0 : i64, tpu.core_type = #tpu.core_type<tc>, window_params = [{transform_indices = @transform_0, window_bounds = array<i64: 1, 7, 32, 128>}, {transform_indices = @transform_1, window_bounds = array<i64: 2, 1, 40, 32>}, {transform_indices = @transform_2, window_bounds = array<i64: 2, 1, 8, 128>}, {transform_indices = @transform_3, window_bounds = array<i64: 1, 1, 8, 128>}, {transform_indices = @transform_4, window_bounds = array<i64: 1, 128>}]} {
    %c0 = arith.constant 0 : index
    %c0_0 = arith.constant 0 : index
    %c0_1 = arith.constant 0 : index
    %c0_2 = arith.constant 0 : index
    %0 = vector.load %arg3[%c0, %c0_0, %c0_1, %c0_2] : memref<2x1x8x128xf32, #tpu.memory_space<vmem>>, vector<2x1x8x128xf32>
    %1 = vector.shape_cast %0 : vector<2x1x8x128xf32> to vector<2x8x128xf32>
    %c0_3 = arith.constant 0 : index
    %c0_4 = arith.constant 0 : index
    %c0_5 = arith.constant 0 : index
    %c0_6 = arith.constant 0 : index
    %2 = vector.load %arg4[%c0_3, %c0_4, %c0_5, %c0_6] : memref<1x1x8x128xf32, #tpu.memory_space<vmem>>, vector<1x1x8x128xf32>
    %3 = vector.shape_cast %2 : vector<1x1x8x128xf32> to vector<8x128xf32>
    %cst = arith.constant 0.000000e+00 : f32
    %4 = vector.broadcast %cst : f32 to vector<16x128xf32>
    %c0_7 = arith.constant 0 : index
    %c0_8 = arith.constant 0 : index
    %c2 = arith.constant 2 : index
    %c0_9 = arith.constant 0 : index
    %5 = tpu.strided_load %arg2[%c0_7, %c0_8, %c2, %c0_9] {strides = array<i32: 1, 1, 4, 1>} : memref<2x1x40x32xf32, #tpu.memory_space<vmem>>, vector<2x1x8x32xf32>
    %6 = vector.shape_cast %5 : vector<2x1x8x32xf32> to vector<2x8x32xf32>
    %7 = vector.shape_cast %6 : vector<2x8x32xf32> to vector<16x32xf32>
    %8 = arith.truncf %7 : vector<16x32xf32> to vector<16x32xbf16>
    %c0_10 = arith.constant 0 : index
    %c0_11 = arith.constant 0 : index
    %c0_12 = arith.constant 0 : index
    %c0_13 = arith.constant 0 : index
    %9 = vector.load %arg1[%c0_10, %c0_11, %c0_12, %c0_13] : memref<1x7x32x128xbf16, #tpu.memory_space<vmem>>, vector<1x1x32x128xbf16>
    %10 = vector.shape_cast %9 : vector<1x1x32x128xbf16> to vector<32x128xbf16>
    %cst_14 = arith.constant dense<0.000000e+00> : vector<16x128xf32>
    %11 = tpu.matmul %8, %10, %cst_14 {dimension_numbers = #tpu.dot_dimension_numbers<[1], [0], [0], [1], [0, 0, 1, 1], [], []>} : vector<16x32xbf16>, vector<32x128xbf16>, vector<16x128xf32> -> vector<16x128xf32>
    %12 = arith.addf %4, %11 : vector<16x128xf32>
    %c0_15 = arith.constant 0 : index
    %c0_16 = arith.constant 0 : index
    %c3 = arith.constant 3 : index
    %c0_17 = arith.constant 0 : index
    %13 = tpu.strided_load %arg2[%c0_15, %c0_16, %c3, %c0_17] {strides = array<i32: 1, 1, 4, 1>} : memref<2x1x40x32xf32, #tpu.memory_space<vmem>>, vector<2x1x8x32xf32>
    %14 = vector.shape_cast %13 : vector<2x1x8x32xf32> to vector<2x8x32xf32>
    %15 = vector.shape_cast %14 : vector<2x8x32xf32> to vector<16x32xf32>
    %16 = arith.truncf %15 : vector<16x32xf32> to vector<16x32xbf16>
    %c0_18 = arith.constant 0 : index
    %c1 = arith.constant 1 : index
    %c0_19 = arith.constant 0 : index
    %c0_20 = arith.constant 0 : index
    %17 = vector.load %arg1[%c0_18, %c1, %c0_19, %c0_20] : memref<1x7x32x128xbf16, #tpu.memory_space<vmem>>, vector<1x1x32x128xbf16>
    %18 = vector.shape_cast %17 : vector<1x1x32x128xbf16> to vector<32x128xbf16>
    %cst_21 = arith.constant dense<0.000000e+00> : vector<16x128xf32>
    %19 = tpu.matmul %16, %18, %cst_21 {dimension_numbers = #tpu.dot_dimension_numbers<[1], [0], [0], [1], [0, 0, 1, 1], [], []>} : vector<16x32xbf16>, vector<32x128xbf16>, vector<16x128xf32> -> vector<16x128xf32>
    %20 = arith.addf %12, %19 : vector<16x128xf32>
    %c0_22 = arith.constant 0 : index
    %c0_23 = arith.constant 0 : index
    %c4 = arith.constant 4 : index
    %c0_24 = arith.constant 0 : index
    %21 = tpu.strided_load %arg2[%c0_22, %c0_23, %c4, %c0_24] {strides = array<i32: 1, 1, 4, 1>} : memref<2x1x40x32xf32, #tpu.memory_space<vmem>>, vector<2x1x8x32xf32>
    %22 = vector.shape_cast %21 : vector<2x1x8x32xf32> to vector<2x8x32xf32>
    %23 = vector.shape_cast %22 : vector<2x8x32xf32> to vector<16x32xf32>
    %24 = arith.truncf %23 : vector<16x32xf32> to vector<16x32xbf16>
    %c0_25 = arith.constant 0 : index
    %c2_26 = arith.constant 2 : index
    %c0_27 = arith.constant 0 : index
    %c0_28 = arith.constant 0 : index
    %25 = vector.load %arg1[%c0_25, %c2_26, %c0_27, %c0_28] : memref<1x7x32x128xbf16, #tpu.memory_space<vmem>>, vector<1x1x32x128xbf16>
    %26 = vector.shape_cast %25 : vector<1x1x32x128xbf16> to vector<32x128xbf16>
    %cst_29 = arith.constant dense<0.000000e+00> : vector<16x128xf32>
    %27 = tpu.matmul %24, %26, %cst_29 {dimension_numbers = #tpu.dot_dimension_numbers<[1], [0], [0], [1], [0, 0, 1, 1], [], []>} : vector<16x32xbf16>, vector<32x128xbf16>, vector<16x128xf32> -> vector<16x128xf32>
    %28 = arith.addf %20, %27 : vector<16x128xf32>
    %c0_30 = arith.constant 0 : index
    %c0_31 = arith.constant 0 : index
    %c5 = arith.constant 5 : index
    %c0_32 = arith.constant 0 : index
    %29 = tpu.strided_load %arg2[%c0_30, %c0_31, %c5, %c0_32] {strides = array<i32: 1, 1, 4, 1>} : memref<2x1x40x32xf32, #tpu.memory_space<vmem>>, vector<2x1x8x32xf32>
    %30 = vector.shape_cast %29 : vector<2x1x8x32xf32> to vector<2x8x32xf32>
    %31 = vector.shape_cast %30 : vector<2x8x32xf32> to vector<16x32xf32>
    %32 = arith.truncf %31 : vector<16x32xf32> to vector<16x32xbf16>
    %c0_33 = arith.constant 0 : index
    %c3_34 = arith.constant 3 : index
    %c0_35 = arith.constant 0 : index
    %c0_36 = arith.constant 0 : index
    %33 = vector.load %arg1[%c0_33, %c3_34, %c0_35, %c0_36] : memref<1x7x32x128xbf16, #tpu.memory_space<vmem>>, vector<1x1x32x128xbf16>
    %34 = vector.shape_cast %33 : vector<1x1x32x128xbf16> to vector<32x128xbf16>
    %cst_37 = arith.constant dense<0.000000e+00> : vector<16x128xf32>
    %35 = tpu.matmul %32, %34, %cst_37 {dimension_numbers = #tpu.dot_dimension_numbers<[1], [0], [0], [1], [0, 0, 1, 1], [], []>} : vector<16x32xbf16>, vector<32x128xbf16>, vector<16x128xf32> -> vector<16x128xf32>
    %36 = arith.addf %28, %35 : vector<16x128xf32>
    %c0_38 = arith.constant 0 : index
    %c0_39 = arith.constant 0 : index
    %c6 = arith.constant 6 : index
    %c0_40 = arith.constant 0 : index
    %37 = tpu.strided_load %arg2[%c0_38, %c0_39, %c6, %c0_40] {strides = array<i32: 1, 1, 4, 1>} : memref<2x1x40x32xf32, #tpu.memory_space<vmem>>, vector<2x1x8x32xf32>
    %38 = vector.shape_cast %37 : vector<2x1x8x32xf32> to vector<2x8x32xf32>
    %39 = vector.shape_cast %38 : vector<2x8x32xf32> to vector<16x32xf32>
    %40 = arith.truncf %39 : vector<16x32xf32> to vector<16x32xbf16>
    %c0_41 = arith.constant 0 : index
    %c4_42 = arith.constant 4 : index
    %c0_43 = arith.constant 0 : index
    %c0_44 = arith.constant 0 : index
    %41 = vector.load %arg1[%c0_41, %c4_42, %c0_43, %c0_44] : memref<1x7x32x128xbf16, #tpu.memory_space<vmem>>, vector<1x1x32x128xbf16>
    %42 = vector.shape_cast %41 : vector<1x1x32x128xbf16> to vector<32x128xbf16>
    %cst_45 = arith.constant dense<0.000000e+00> : vector<16x128xf32>
    %43 = tpu.matmul %40, %42, %cst_45 {dimension_numbers = #tpu.dot_dimension_numbers<[1], [0], [0], [1], [0, 0, 1, 1], [], []>} : vector<16x32xbf16>, vector<32x128xbf16>, vector<16x128xf32> -> vector<16x128xf32>
    %44 = arith.addf %36, %43 : vector<16x128xf32>
    %c0_46 = arith.constant 0 : index
    %c0_47 = arith.constant 0 : index
    %c7 = arith.constant 7 : index
    %c0_48 = arith.constant 0 : index
    %45 = tpu.strided_load %arg2[%c0_46, %c0_47, %c7, %c0_48] {strides = array<i32: 1, 1, 4, 1>} : memref<2x1x40x32xf32, #tpu.memory_space<vmem>>, vector<2x1x8x32xf32>
    %46 = vector.shape_cast %45 : vector<2x1x8x32xf32> to vector<2x8x32xf32>
    %47 = vector.shape_cast %46 : vector<2x8x32xf32> to vector<16x32xf32>
    %48 = arith.truncf %47 : vector<16x32xf32> to vector<16x32xbf16>
    %c0_49 = arith.constant 0 : index
    %c5_50 = arith.constant 5 : index
    %c0_51 = arith.constant 0 : index
    %c0_52 = arith.constant 0 : index
    %49 = vector.load %arg1[%c0_49, %c5_50, %c0_51, %c0_52] : memref<1x7x32x128xbf16, #tpu.memory_space<vmem>>, vector<1x1x32x128xbf16>
    %50 = vector.shape_cast %49 : vector<1x1x32x128xbf16> to vector<32x128xbf16>
    %cst_53 = arith.constant dense<0.000000e+00> : vector<16x128xf32>
    %51 = tpu.matmul %48, %50, %cst_53 {dimension_numbers = #tpu.dot_dimension_numbers<[1], [0], [0], [1], [0, 0, 1, 1], [], []>} : vector<16x32xbf16>, vector<32x128xbf16>, vector<16x128xf32> -> vector<16x128xf32>
    %52 = arith.addf %44, %51 : vector<16x128xf32>
    %c0_54 = arith.constant 0 : index
    %c0_55 = arith.constant 0 : index
    %c8 = arith.constant 8 : index
    %c0_56 = arith.constant 0 : index
    %53 = tpu.strided_load %arg2[%c0_54, %c0_55, %c8, %c0_56] {strides = array<i32: 1, 1, 4, 1>} : memref<2x1x40x32xf32, #tpu.memory_space<vmem>>, vector<2x1x8x32xf32>
    %54 = vector.shape_cast %53 : vector<2x1x8x32xf32> to vector<2x8x32xf32>
    %55 = vector.shape_cast %54 : vector<2x8x32xf32> to vector<16x32xf32>
    %56 = arith.truncf %55 : vector<16x32xf32> to vector<16x32xbf16>
    %c0_57 = arith.constant 0 : index
    %c6_58 = arith.constant 6 : index
    %c0_59 = arith.constant 0 : index
    %c0_60 = arith.constant 0 : index
    %57 = vector.load %arg1[%c0_57, %c6_58, %c0_59, %c0_60] : memref<1x7x32x128xbf16, #tpu.memory_space<vmem>>, vector<1x1x32x128xbf16>
    %58 = vector.shape_cast %57 : vector<1x1x32x128xbf16> to vector<32x128xbf16>
    %cst_61 = arith.constant dense<0.000000e+00> : vector<16x128xf32>
    %59 = tpu.matmul %56, %58, %cst_61 {dimension_numbers = #tpu.dot_dimension_numbers<[1], [0], [0], [1], [0, 0, 1, 1], [], []>} : vector<16x32xbf16>, vector<32x128xbf16>, vector<16x128xf32> -> vector<16x128xf32>
    %60 = arith.addf %52, %59 : vector<16x128xf32>
    %61 = vector.shape_cast %60 : vector<16x128xf32> to vector<2x8x128xf32>
    %62 = arith.subf %61, %1 : vector<2x8x128xf32>
    %63 = math.absf %62 : vector<2x8x128xf32>
    %64 = vector.shape_cast %3 : vector<8x128xf32> to vector<1x8x128xf32>
    %65 = vector.broadcast %64 : vector<1x8x128xf32> to vector<2x8x128xf32>
    %66 = arith.mulf %63, %65 : vector<2x8x128xf32>
    %67 = vector.shape_cast %66 : vector<2x8x128xf32> to vector<1x2x8x128xf32>
    %cst_62 = arith.constant dense<0.000000e+00> : vector<1xf32>
    %68 = vector.multi_reduction <add>, %67, %cst_62 [1, 2, 3] : vector<1x2x8x128xf32> to vector<1xf32>
    %69 = vector.shape_cast %68 : vector<1xf32> to vector<1x1x1x1xf32>
    %70 = vector.extract %69[0, 0, 0, 0] : f32 from vector<1x1x1x1xf32>
    %71 = vector.broadcast %70 : f32 to vector<1x128xf32>
    %c0_63 = arith.constant 0 : index
    %c0_64 = arith.constant 0 : index
    %72 = vector.load %arg5[%c0_63, %c0_64] : memref<1x128xf32, #tpu.memory_space<vmem>>, vector<1x128xf32>
    tpu.vector_store %arg5[%c0_63, %c0_64], %71 {strides = array<i32>} : memref<1x128xf32, #tpu.memory_space<vmem>>, vector<1x128xf32>,
    return
  }
  func.func @transform_0(%arg0: i32) -> (i32, i32, i32, i32) {
    %c0_i32 = arith.constant 0 : i32
    %c0_i32_0 = arith.constant 0 : i32
    %c0_i32_1 = arith.constant 0 : i32
    %c0_i32_2 = arith.constant 0 : i32
    return %arg0, %c0_i32, %c0_i32_0, %c0_i32_1 : i32, i32, i32, i32
  }
  func.func @transform_1(%arg0: i32) -> (i32, i32, i32, i32) {
    %c0_i32 = arith.constant 0 : i32
    %c0_i32_0 = arith.constant 0 : i32
    %c0_i32_1 = arith.constant 0 : i32
    %c0_i32_2 = arith.constant 0 : i32
    return %c0_i32, %arg0, %c0_i32_0, %c0_i32_1 : i32, i32, i32, i32
  }
  func.func @transform_2(%arg0: i32) -> (i32, i32, i32, i32) {
    %c0_i32 = arith.constant 0 : i32
    %c0_i32_0 = arith.constant 0 : i32
    %c0_i32_1 = arith.constant 0 : i32
    %c0_i32_2 = arith.constant 0 : i32
    return %c0_i32, %arg0, %c0_i32_0, %c0_i32_1 : i32, i32, i32, i32
  }
  func.func @transform_3(%arg0: i32) -> (i32, i32, i32, i32) {
    %c0_i32 = arith.constant 0 : i32
    %c0_i32_0 = arith.constant 0 : i32
    %c0_i32_1 = arith.constant 0 : i32
    %c0_i32_2 = arith.constant 0 : i32
    return %c0_i32, %arg0, %c0_i32_0, %c0_i32_1 : i32, i32, i32, i32
  }
  func.func @transform_4(%arg0: i32) -> (i32, i32) {
    %c0_i32 = arith.constant 0 : i32
    %c0_i32_0 = arith.constant 0 : i32
    return %c0_i32, %arg0 : i32, i32
  }
}

</mosaic_0001>

<llo_original>
// kernel: tpu_custom_call.1
$region0: #{tpu_custom_call.1}
  #allocation0 [shape = 'u32[]', space=smem, size = 0x4, offset = 0x4, fixed_abs, tag = 'smem constant byte address 0x4 - core index']
  #allocation1 [shape = 'u32[72,128]{1,0:T(1,128)}', space=vmem, size = 0x9000, scoped, tag = 'internal scratch']
  %s0 = inlined_call_operand.vmem [shape: bf16[4,7,32,128], index: 0, kind: input, shape index: {}]
  %s1 = inlined_call_operand.vmem [shape: f32[2,4,40,32], index: 1, kind: input, shape index: {}]
  %s2 = inlined_call_operand.vmem [shape: f32[2,4,8,128], index: 2, kind: input, shape index: {}]
  %s3 = inlined_call_operand.vmem [shape: f32[1,4,8,128], index: 3, kind: input, shape index: {}]
  %s4 = inlined_call_operand.hbm [shape: f32[1,512], index: 4, kind: output, shape index: {}]
  %s5 = sld [smem:[#allocation0]]
  $region125: #{tpu_custom_call.1} parent=0
    _
  %s7 = ssub.s32 1, %s5
  %s8 = scalar_select 0, %s7, %s5
  $region1: #{tpu_custom_call.1} parent=0
    #allocation2 [shape = 'u8[81920]{0}', space=vmem, size = 0x14000, scoped, tag = 'input window, operand 1']
    #allocation3 [shape = 'u8[16384]{0}', space=vmem, size = 0x4000, scoped, tag = 'input window, operand 2']
    #allocation4 [shape = 'u8[1024]{0}', space=vmem, size = 0x400, scoped, tag = 'output window, operand 0']
    #allocation5 [shape = 's32[2]{0}', space=sflag, size = 0x8, scoped, tag = 'scoped memory for tpu_custom_call.1']
    %9 = vsyncpa [#allocation5], 0
    %s10 = scalar_lea.sflag [#allocation5], 1
    %11 = vsyncpa %s10, 0
    loop: start=0, step=1, limit=6
    $region2: #{tpu_custom_call.1} parent=1 // loop_pre_header
      _
    $region3: #{tpu_custom_call.1} parent=1 // loop_header
      %s13 = sphi 0, %s17
      %p14 = scmp.ge.s32.totalorder %s13, 6
      %s23 = sphi 0, %s25
      %s26 = sphi 0, %s23
      %s27 = sphi 0, %s26
      %s43 = sphi 0, %s27
      %s49 = sphi 0, %s51
      %s52 = sphi 0, %s49
      %s53 = sphi 0, %s52
      %s69 = sphi 0, %s53
      %s75 = sphi 0, %s77
      %s78 = sphi 0, %s75
      %s79 = sphi 0, %s78
      %s95 = sphi 0, %s79
      %s101 = sphi 0, %s103
      %s104 = sphi 0, %s101
      %s105 = sphi 0, %s104
      %s121 = sphi 0, %s105
      %s127 = sphi 0, %s129
      %s130 = sphi 0, %s127
      %s131 = sphi 0, %s130
      %s147 = sphi 0, %s131
    $region4: #{tpu_custom_call.1} parent=1 // loop_header_branch
      %16 = sbr.rel (%p14) target = $region8
    $region5: #{tpu_custom_call.1} parent=1 // loop_body
      %s18 = ssub.s32 %s13, 1
      %s19 = ssub.s32 %s13, 2
      %s20 = sadd.s32 %s13, 1
      %s21 = ssub.s32 %s13, %s20
      %p22 = scmp.eq.s32.totalorder %s21, 0
      %s24 = sadd.s32 %s23, 1
      %s25 = scalar_select %p22, %s23, %s24
      %p28 = pneg %p22
      %p29 = scmp.eq.s32.totalorder %s13, 3
      %p30 = por %p28, %p29
      %p31 = scmp.ne.s32.totalorder %s23, %s26
      %p32 = scmp.eq.s32.totalorder %s13, 0
      %p33 = por %p31, %p32
      %p34 = scmp.ne.s32.totalorder %s23, %s26
      %p35 = scmp.eq.s32.totalorder %s18, 3
      %p36 = por %p34, %p35
      %p37 = scmp.ne.s32.totalorder %s26, %s27
      %p38 = scmp.eq.s32.totalorder %s18, 0
      %p39 = por %p37, %p38
      %p40 = scmp.ne.s32.totalorder %s26, %s27
      %p41 = scmp.eq.s32.totalorder %s19, 3
      %p42 = por %p40, %p41
      %p44 = scmp.ne.s32.totalorder %s27, %s43
      %p45 = scmp.eq.s32.totalorder %s19, 0
      %p46 = por %p44, %p45
      %s47 = ssub.s32 %s13, %s20
      %p48 = scmp.eq.s32.totalorder %s47, 0
      %s50 = sadd.s32 %s49, 1
      %s51 = scalar_select %p48, %s49, %s50
      %p54 = pneg %p48
      %p55 = scmp.eq.s32.totalorder %s13, 3
      %p56 = por %p54, %p55
      %p57 = scmp.ne.s32.totalorder %s49, %s52
      %p58 = scmp.eq.s32.totalorder %s13, 0
      %p59 = por %p57, %p58
      %p60 = scmp.ne.s32.totalorder %s49, %s52
      %p61 = scmp.eq.s32.totalorder %s18, 3
      %p62 = por %p60, %p61
      %p63 = scmp.ne.s32.totalorder %s52, %s53
      %p64 = scmp.eq.s32.totalorder %s18, 0
      %p65 = por %p63, %p64
      %p66 = scmp.ne.s32.totalorder %s52, %s53
      %p67 = scmp.eq.s32.totalorder %s19, 3
      %p68 = por %p66, %p67
      %p70 = scmp.ne.s32.totalorder %s53, %s69
      %p71 = scmp.eq.s32.totalorder %s19, 0
      %p72 = por %p70, %p71
      %s73 = ssub.s32 %s13, %s20
      %p74 = scmp.eq.s32.totalorder %s73, 0
      %s76 = sadd.s32 %s75, 1
      %s77 = scalar_select %p74, %s75, %s76
      %p80 = pneg %p74
      %p81 = scmp.eq.s32.totalorder %s13, 3
      %p82 = por %p80, %p81
      %p83 = scmp.ne.s32.totalorder %s75, %s78
      %p84 = scmp.eq.s32.totalorder %s13, 0
      %p85 = por %p83, %p84
      %p86 = scmp.ne.s32.totalorder %s75, %s78
      %p87 = scmp.eq.s32.totalorder %s18, 3
      %p88 = por %p86, %p87
      %p89 = scmp.ne.s32.totalorder %s78, %s79
      %p90 = scmp.eq.s32.totalorder %s18, 0
      %p91 = por %p89, %p90
      %p92 = scmp.ne.s32.totalorder %s78, %s79
      %p93 = scmp.eq.s32.totalorder %s19, 3
      %p94 = por %p92, %p93
      %p96 = scmp.ne.s32.totalorder %s79, %s95
      %p97 = scmp.eq.s32.totalorder %s19, 0
      %p98 = por %p96, %p97
      %s99 = ssub.s32 %s13, %s20
      %p100 = scmp.eq.s32.totalorder %s99, 0
      %s102 = sadd.s32 %s101, 1
      %s103 = scalar_select %p100, %s101, %s102
      %p106 = pneg %p100
      %p107 = scmp.eq.s32.totalorder %s13, 3
      %p108 = por %p106, %p107
      %p109 = scmp.ne.s32.totalorder %s101, %s104
      %p110 = scmp.eq.s32.totalorder %s13, 0
      %p111 = por %p109, %p110
      %p112 = scmp.ne.s32.totalorder %s101, %s104
      %p113 = scmp.eq.s32.totalorder %s18, 3
      %p114 = por %p112, %p113
      %p115 = scmp.ne.s32.totalorder %s104, %s105
      %p116 = scmp.eq.s32.totalorder %s18, 0
      %p117 = por %p115, %p116
      %p118 = scmp.ne.s32.totalorder %s104, %s105
      %p119 = scmp.eq.s32.totalorder %s19, 3
      %p120 = por %p118, %p119
      %p122 = scmp.ne.s32.totalorder %s105, %s121
      %p123 = scmp.eq.s32.totalorder %s19, 0
      %p124 = por %p122, %p123
      %s125 = ssub.s32 %s13, %s20
      %p126 = scmp.eq.s32.totalorder %s125, 0
      %s128 = sadd.s32 %s127, 1
      %s129 = scalar_select %p126, %s127, %s128
      %p132 = pneg %p126
      %p133 = scmp.eq.s32.totalorder %s13, 3
      %p134 = por %p132, %p133
      %p135 = scmp.ne.s32.totalorder %s127, %s130
      %p136 = scmp.eq.s32.totalorder %s13, 0
      %p137 = por %p135, %p136
      %p138 = scmp.ne.s32.totalorder %s127, %s130
      %p139 = scmp.eq.s32.totalorder %s18, 3
      %p140 = por %p138, %p139
      %p141 = scmp.ne.s32.totalorder %s130, %s131
      %p142 = scmp.eq.s32.totalorder %s18, 0
      %p143 = por %p141, %p142
      %p144 = scmp.ne.s32.totalorder %s130, %s131
      %p145 = scmp.eq.s32.totalorder %s19, 3
      %p146 = por %p144, %p145
      %p148 = scmp.ne.s32.totalorder %s131, %s147
      %p149 = scmp.eq.s32.totalorder %s19, 0
      %p150 = por %p148, %p149
      %p151 = scmp.le.s32.totalorder 1, %s13
      %p152 = scmp.lt.s32.totalorder %s13, 5
      %p153 = pnand %p151, %p152
      %p154 = pneg %p153
      // Predicated region
      $region9: #{tpu_custom_call.1} parent=5 // pred_check
        _
      $region10: #{tpu_custom_call.1} parent=5 // pred_check_branch
        %156 = sbr.rel (%p153) target = $region12
      $region11: #{tpu_custom_call.1} parent=5 // pred_region
        %s157 = ssub.s32 %s13, 1
      $region12: #{tpu_custom_call.1} parent=5 // pred_fallthru
        _
      %p158 = scmp.lt.s32.totalorder %s13, 4
      // Predicated region
      $region13: #{tpu_custom_call.1} parent=5 // pred_check
        %p159 = pneg %p158
      $region14: #{tpu_custom_call.1} parent=5 // pred_check_branch
        %161 = sbr.rel (%p159) target = $region16
      $region15: #{tpu_custom_call.1} parent=5 // pred_region
        // Predicated region
        $region17: #{tpu_custom_call.1} parent=15 // pred_check
          %p162 = pneg %p33
        $region18: #{tpu_custom_call.1} parent=15 // pred_check_branch
          %164 = sbr.rel (%p162) target = $region20
        $region19: #{tpu_custom_call.1} parent=15 // pred_region
          %p165 = scmp.lt.s32.totalorder %s13, 3
          %s166 = scalar_select %p165, %s13, 3
          %s167 = smul.addr %s166, 28
          %s168 = smul.addr %s167, 4
          %s169 = scalar_lea.vmem %s0, %s168
        $region20: #{tpu_custom_call.1} parent=15 // pred_fallthru
          _
        // Predicated region
        $region21: #{tpu_custom_call.1} parent=15 // pred_check
          %p170 = pneg %p59
        $region22: #{tpu_custom_call.1} parent=15 // pred_check_branch
          %172 = sbr.rel (%p170) target = $region24
        $region23: #{tpu_custom_call.1} parent=15 // pred_region
          %s173 = sand.u32 %s49, 1
          %s174 = sand.u32 %s49, 1
          %s175 = smul.addr %s174, 80
          %s176 = scalar_lea.vmem [#allocation2], %s175
          %s177 = smul.addr %s13, 5
          %s178 = smul.addr %s177, 8
          %s179 = scalar_lea.vmem %s1, %s178
          // Predicated region
          $region25: #{tpu_custom_call.1} parent=23 // pred_check
            _
          $region26: #{tpu_custom_call.1} parent=23 // pred_check_branch
            %181 = sbr.rel (0) target = $region28
          $region27: #{tpu_custom_call.1} parent=23 // pred_region
            // Predicated region
            $region29: #{tpu_custom_call.1} parent=27 // pred_check
              _
            $region30: #{tpu_custom_call.1} parent=27 // pred_check_branch
              %183 = sbr.rel (0) target = $region32
            $region31: #{tpu_custom_call.1} parent=27 // pred_region
              // Predicated region
              $region44: #{tpu_custom_call.1} parent=31 // pred_check
                _
              $region45: #{tpu_custom_call.1} parent=31 // pred_check_branch
                %217 = sbr.rel (0) target = $region47
              $region46: #{tpu_custom_call.1} parent=31 // pred_region
                loop: start=0, step=1, limit=1
                $region48: #{tpu_custom_call.1} parent=46 // loop_pre_header
                  _
                $region49: #{tpu_custom_call.1} parent=46 // loop_header
                  %s219 = sphi 0, %s223
                  %p220 = scmp.ge.s32.totalorder %s219, 1
                  %s224 = sphi %s179, %s179
                  %s225 = sphi %s176, %s176
                $region50: #{tpu_custom_call.1} parent=46 // loop_header_branch
                  %222 = sbr.rel (%p220) target = $region54
                $region51: #{tpu_custom_call.1} parent=46 // loop_body
                  %v226 = vld [vmem:[%s224] sm:$0xff]
                  %227 = vst [vmem:[%s225] sm:$0xff] %v226
                  %v228 = vld [vmem:[%s224 + $0x8] sm:$0xff]
                  %229 = vst [vmem:[%s225 + $0x8] sm:$0xff] %v228
                  %v230 = vld [vmem:[%s224 + $0x10] sm:$0xff]
                  %231 = vst [vmem:[%s225 + $0x10] sm:$0xff] %v230
                  %v232 = vld [vmem:[%s224 + $0x18] sm:$0xff]
                  %233 = vst [vmem:[%s225 + $0x18] sm:$0xff] %v232
                  %v234 = vld [vmem:[%s224 + $0x20] sm:$0xff]
                  %235 = vst [vmem:[%s225 + $0x20] sm:$0xff] %v234
                  %v236 = vld [vmem:[%s224 + $0xa0] sm:$0xff]
                  %237 = vst [vmem:[%s225 + $0x28] sm:$0xff] %v236
                  %v238 = vld [vmem:[%s224 + $0xa8] sm:$0xff]
                  %239 = vst [vmem:[%s225 + $0x30] sm:$0xff] %v238
                  %v240 = vld [vmem:[%s224 + $0xb0] sm:$0xff]
                  %241 = vst [vmem:[%s225 + $0x38] sm:$0xff] %v240
                  %v242 = vld [vmem:[%s224 + $0xb8] sm:$0xff]
                  %243 = vst [vmem:[%s225 + $0x40] sm:$0xff] %v242
                  %v244 = vld [vmem:[%s224 + $0xc0] sm:$0xff]
                  %245 = vst [vmem:[%s225 + $0x48] sm:$0xff] %v244
                $region52: #{tpu_custom_call.1} parent=46 // loop_footer
                  %s223 = sadd.s32 1, %s219
                $region53: #{tpu_custom_call.1} parent=46 // loop_footer_branch
                  %218 = sbr.rel target = $region49
                $region54: #{tpu_custom_call.1} parent=46 // loop_exit
                  _
              $region47: #{tpu_custom_call.1} parent=31 // pred_fallthru
                _
              // Predicated region
              $region55: #{tpu_custom_call.1} parent=31 // pred_check
                _
              $region56: #{tpu_custom_call.1} parent=31 // pred_check_branch
                %247 = sbr.rel target = $region58
              $region57: #{tpu_custom_call.1} parent=31 // pred_region
                _
              $region58: #{tpu_custom_call.1} parent=31 // pred_fallthru
                _
            $region32: #{tpu_custom_call.1} parent=27 // pred_fallthru
              _
            // Predicated region
            $region33: #{tpu_custom_call.1} parent=27 // pred_check
              _
            $region34: #{tpu_custom_call.1} parent=27 // pred_check_branch
              %185 = sbr.rel target = $region36
            $region35: #{tpu_custom_call.1} parent=27 // pred_region
              %s187 = ssub.s32 256, 1
              loop: start=0, step=1, limit=1
              $region37: #{tpu_custom_call.1} parent=35 // loop_pre_header
                _
              $region38: #{tpu_custom_call.1} parent=35 // loop_header
                %s189 = sphi 0, %s193
                %p190 = scmp.ge.s32.totalorder %s189, 1
                %s194 = sphi %s179, %s179
                %s195 = sphi %s176, %s176
              $region39: #{tpu_custom_call.1} parent=35 // loop_header_branch
                %192 = sbr.rel (%p190) target = $region43
              $region40: #{tpu_custom_call.1} parent=35 // loop_body
                %v196 = vld [vmem:[%s194] sm:%s187]
                %197 = vst [vmem:[%s195] sm:%s187] %v196
                %v198 = vld [vmem:[%s194 + $0x8] sm:%s187]
                %199 = vst [vmem:[%s195 + $0x8] sm:%s187] %v198
                %v200 = vld [vmem:[%s194 + $0x10] sm:%s187]
                %201 = vst [vmem:[%s195 + $0x10] sm:%s187] %v200
                %v202 = vld [vmem:[%s194 + $0x18] sm:%s187]
                %203 = vst [vmem:[%s195 + $0x18] sm:%s187] %v202
                %v204 = vld [vmem:[%s194 + $0x20] sm:%s187]
                %205 = vst [vmem:[%s195 + $0x20] sm:%s187] %v204
                %v206 = vld [vmem:[%s194 + $0xa0] sm:%s187]
                %207 = vst [vmem:[%s195 + $0x28] sm:%s187] %v206
                %v208 = vld [vmem:[%s194 + $0xa8] sm:%s187]
                %209 = vst [vmem:[%s195 + $0x30] sm:%s187] %v208
                %v210 = vld [vmem:[%s194 + $0xb0] sm:%s187]
                %211 = vst [vmem:[%s195 + $0x38] sm:%s187] %v210
                %v212 = vld [vmem:[%s194 + $0xb8] sm:%s187]
                %213 = vst [vmem:[%s195 + $0x40] sm:%s187] %v212
                %v214 = vld [vmem:[%s194 + $0xc0] sm:%s187]
                %215 = vst [vmem:[%s195 + $0x48] sm:%s187] %v214
              $region41: #{tpu_custom_call.1} parent=35 // loop_footer
                %s193 = sadd.s32 1, %s189
              $region42: #{tpu_custom_call.1} parent=35 // loop_footer_branch
                %188 = sbr.rel target = $region38
              $region43: #{tpu_custom_call.1} parent=35 // loop_exit
                _
            $region36: #{tpu_custom_call.1} parent=27 // pred_fallthru
              _
          $region28: #{tpu_custom_call.1} parent=23 // pred_fallthru
            _
          %248 = vnop
        $region24: #{tpu_custom_call.1} parent=15 // pred_fallthru
          _
        // Predicated region
        $region59: #{tpu_custom_call.1} parent=15 // pred_check
          %p249 = pneg %p85
        $region60: #{tpu_custom_call.1} parent=15 // pred_check_branch
          %251 = sbr.rel (%p249) target = $region62
        $region61: #{tpu_custom_call.1} parent=15 // pred_region
          %s252 = sand.u32 %s75, 1
          %s253 = sand.u32 %s75, 1
          %s254 = smul.addr %s253, 16
          %s255 = scalar_lea.vmem [#allocation3], %s254
          %s256 = smul.addr %s13, 8
          %s257 = scalar_lea.vmem %s2, %s256
          // Predicated region
          $region63: #{tpu_custom_call.1} parent=61 // pred_check
            _
          $region64: #{tpu_custom_call.1} parent=61 // pred_check_branch
            %259 = sbr.rel (0) target = $region66
          $region65: #{tpu_custom_call.1} parent=61 // pred_region
            // Predicated region
            $region67: #{tpu_custom_call.1} parent=65 // pred_check
              _
            $region68: #{tpu_custom_call.1} parent=65 // pred_check_branch
              %261 = sbr.rel (0) target = $region70
            $region69: #{tpu_custom_call.1} parent=65 // pred_region
              // Predicated region
              $region82: #{tpu_custom_call.1} parent=69 // pred_check
                _
              $region83: #{tpu_custom_call.1} parent=69 // pred_check_branch
                %279 = sbr.rel (0) target = $region85
              $region84: #{tpu_custom_call.1} parent=69 // pred_region
                loop: start=0, step=1, limit=1
                $region86: #{tpu_custom_call.1} parent=84 // loop_pre_header
                  _
                $region87: #{tpu_custom_call.1} parent=84 // loop_header
                  %s281 = sphi 0, %s285
                  %p282 = scmp.ge.s32.totalorder %s281, 1
                  %s286 = sphi %s257, %s257
                  %s287 = sphi %s255, %s255
                $region88: #{tpu_custom_call.1} parent=84 // loop_header_branch
                  %284 = sbr.rel (%p282) target = $region92
                $region89: #{tpu_custom_call.1} parent=84 // loop_body
                  %v288 = vld [vmem:[%s286] sm:$0xff]
                  %289 = vst [vmem:[%s287] sm:$0xff] %v288
                  %v290 = vld [vmem:[%s286 + $0x20] sm:$0xff]
                  %291 = vst [vmem:[%s287 + $0x8] sm:$0xff] %v290
                $region90: #{tpu_custom_call.1} parent=84 // loop_footer
                  %s285 = sadd.s32 1, %s281
                $region91: #{tpu_custom_call.1} parent=84 // loop_footer_branch
                  %280 = sbr.rel target = $region87
                $region92: #{tpu_custom_call.1} parent=84 // loop_exit
                  _
              $region85: #{tpu_custom_call.1} parent=69 // pred_fallthru
                _
              // Predicated region
              $region93: #{tpu_custom_call.1} parent=69 // pred_check
                _
              $region94: #{tpu_custom_call.1} parent=69 // pred_check_branch
                %293 = sbr.rel target = $region96
              $region95: #{tpu_custom_call.1} parent=69 // pred_region
                _
              $region96: #{tpu_custom_call.1} parent=69 // pred_fallthru
                _
            $region70: #{tpu_custom_call.1} parent=65 // pred_fallthru
              _
            // Predicated region
            $region71: #{tpu_custom_call.1} parent=65 // pred_check
              _
            $region72: #{tpu_custom_call.1} parent=65 // pred_check_branch
              %263 = sbr.rel target = $region74
            $region73: #{tpu_custom_call.1} parent=65 // pred_region
              %s265 = ssub.s32 256, 1
              loop: start=0, step=1, limit=1
              $region75: #{tpu_custom_call.1} parent=73 // loop_pre_header
                _
              $region76: #{tpu_custom_call.1} parent=73 // loop_header
                %s267 = sphi 0, %s271
                %p268 = scmp.ge.s32.totalorder %s267, 1
                %s272 = sphi %s257, %s257
                %s273 = sphi %s255, %s255
              $region77: #{tpu_custom_call.1} parent=73 // loop_header_branch
                %270 = sbr.rel (%p268) target = $region81
              $region78: #{tpu_custom_call.1} parent=73 // loop_body
                %v274 = vld [vmem:[%s272] sm:%s265]
                %275 = vst [vmem:[%s273] sm:%s265] %v274
                %v276 = vld [vmem:[%s272 + $0x20] sm:%s265]
                %277 = vst [vmem:[%s273 + $0x8] sm:%s265] %v276
              $region79: #{tpu_custom_call.1} parent=73 // loop_footer
                %s271 = sadd.s32 1, %s267
              $region80: #{tpu_custom_call.1} parent=73 // loop_footer_branch
                %266 = sbr.rel target = $region76
              $region81: #{tpu_custom_call.1} parent=73 // loop_exit
                _
            $region74: #{tpu_custom_call.1} parent=65 // pred_fallthru
              _
          $region66: #{tpu_custom_call.1} parent=61 // pred_fallthru
            _
          %294 = vnop
        $region62: #{tpu_custom_call.1} parent=15 // pred_fallthru
          _
        // Predicated region
        $region97: #{tpu_custom_call.1} parent=15 // pred_check
          %p295 = pneg %p111
        $region98: #{tpu_custom_call.1} parent=15 // pred_check_branch
          %297 = sbr.rel (%p295) target = $region100
        $region99: #{tpu_custom_call.1} parent=15 // pred_region
          %p298 = scmp.lt.s32.totalorder %s13, 3
          %s299 = scalar_select %p298, %s13, 3
          %s300 = smul.addr %s299, 8
          %s301 = scalar_lea.vmem %s3, %s300
        $region100: #{tpu_custom_call.1} parent=15 // pred_fallthru
          _
      $region16: #{tpu_custom_call.1} parent=5 // pred_fallthru
        _
      %p302 = scmp.le.s32.totalorder 1, %s13
      %p303 = scmp.lt.s32.totalorder %s13, 5
      %p304 = pnand %p302, %p303
      %p305 = pneg %p304
      // Predicated region
      $region101: #{tpu_custom_call.1} parent=5 // pred_check
        _
      $region102: #{tpu_custom_call.1} parent=5 // pred_check_branch
        %307 = sbr.rel (%p304) target = $region104
      $region103: #{tpu_custom_call.1} parent=5 // pred_region
        %s308 = ssub.s32 %s13, 1
        %s309 = sand.u32 %s52, 1
        %s310 = sand.u32 %s52, 1
        %s311 = smul.addr %s310, 80
        %s312 = scalar_lea.vmem [#allocation2], %s311
        // Predicated region
        $region105: #{tpu_custom_call.1} parent=103 // pred_check
          %p313 = pneg %p65
        $region106: #{tpu_custom_call.1} parent=103 // pred_check_branch
          %315 = sbr.rel (%p313) target = $region108
        $region107: #{tpu_custom_call.1} parent=103 // pred_region
          _
        $region108: #{tpu_custom_call.1} parent=103 // pred_fallthru
          _
        %s316 = sand.u32 %s78, 1
        %s317 = sand.u32 %s78, 1
        %s318 = smul.addr %s317, 16
        %s319 = scalar_lea.vmem [#allocation3], %s318
        // Predicated region
        $region109: #{tpu_custom_call.1} parent=103 // pred_check
          %p320 = pneg %p91
        $region110: #{tpu_custom_call.1} parent=103 // pred_check_branch
          %322 = sbr.rel (%p320) target = $region112
        $region111: #{tpu_custom_call.1} parent=103 // pred_region
          _
        $region112: #{tpu_custom_call.1} parent=103 // pred_fallthru
          _
        %p323 = scmp.lt.s32.totalorder %s18, 3
        %s324 = scalar_select %p323, %s18, 3
        %s325 = smul.addr %s324, 28
        %s326 = smul.addr %s325, 4
        %s327 = scalar_lea.vmem %s0, %s326
        %p328 = pneg %p39
        %p329 = pneg %p36
        %s330 = sand.u32 %s52, 1
        %s331 = sand.u32 %s52, 1
        %s332 = smul.addr %s331, 80
        %s333 = scalar_lea.vmem [#allocation2], %s332
        %p334 = pneg %p65
        %p335 = pneg %p62
        %s336 = sand.u32 %s78, 1
        %s337 = sand.u32 %s78, 1
        %s338 = smul.addr %s337, 16
        %s339 = scalar_lea.vmem [#allocation3], %s338
        %p340 = pneg %p91
        %p341 = pneg %p88
        %p342 = scmp.lt.s32.totalorder %s18, 3
        %s343 = scalar_select %p342, %s18, 3
        %s344 = smul.addr %s343, 8
        %s345 = scalar_lea.vmem %s3, %s344
        %p346 = pneg %p117
        %p347 = pneg %p114
        %p348 = pneg %p143
        %p349 = pneg %p140
        %s350 = sand.u32 %s130, 1
        %s351 = scalar_lea.sflag [#allocation5], %s350
        %s352 = sand.u32 %s130, 1
        %s353 = scalar_lea.vmem [#allocation4], %s352
        %p354 = scmp.lt.s32.totalorder %s18, 3
        %s355 = scalar_select %p354, %s18, 3
        %s356 = smul.addr %s355, 28
        %s357 = smul.addr %s356, 4
        %s358 = scalar_lea.vmem %s0, %s357
        %p359 = scmp.lt.s32.totalorder %s18, 3
        %s360 = scalar_select %p359, %s18, 3
        %s361 = smul.addr %s360, 8
        %s362 = scalar_lea.vmem %s3, %s361
        %v364 = vld [vmem:[%s319] sm:$0xff]
        %v365 = vld [vmem:[%s319 + $0x8] sm:$0xff]
        %v366 = vld [vmem:[%s362] sm:$0xff]
        %s367 = scalar_lea.vmem %s312, 2 [#allocation2]
        %v368 = vld [vmem:[%s367] ss:$4 sm:$0xff]
        %s369 = scalar_lea.vmem %s312, 42 [#allocation2]
        %v370 = vld [vmem:[%s369] ss:$4 sm:$0xff]
        %v371 = vpack.c.bf16 %v370, %v368
        %v372 = vld [vmem:[%s358] sm:$0xf]
        %v373 = vld [vmem:[%s358 + $0x4] sm:$0xf]
        %v374 = vld [vmem:[%s358 + $0x8] sm:$0xf]
        %v375 = vld [vmem:[%s358 + $0xc] sm:$0xf]
        %s376 = scalar_lea.vmem %s312, 3 [#allocation2]
        %v377 = vld [vmem:[%s376] ss:$4 sm:$0xff]
        %s378 = scalar_lea.vmem %s312, 43 [#allocation2]
        %v379 = vld [vmem:[%s378] ss:$4 sm:$0xff]
        %v380 = vpack.c.bf16 %v379, %v377
        %s381 = scalar_lea.vmem %s358, 16
        %v382 = vld [vmem:[%s381] sm:$0xf]
        %v383 = vld [vmem:[%s381 + $0x4] sm:$0xf]
        %v384 = vld [vmem:[%s381 + $0x8] sm:$0xf]
        %v385 = vld [vmem:[%s381 + $0xc] sm:$0xf]
        %v390 = vunpack.c.l.b16 %v382
        %v391 = vunpack.c.l.b16 %v383
        %v392 = vunpack.c.l.b16 %v384
        %v393 = vunpack.c.l.b16 %v385
        %v394 = vpack.c.b16 %v391, %v390
        %v395 = vpack.c.b16 %v393, %v392
        %vm398 = vcmask 261120
        %v400 = vsel %vm398, %v380, 0
        %402 = vmatpush.bf16.msra.mxu0 0
        %403 = vmatpush.bf16.msra.mxu0 0
        %404 = vmatpush.bf16.msra.mxu0 0
        %405 = vmatpush.bf16.msra.mxu0 0
        %406 = vmatpush.bf16.msra.mxu0 0
        %407 = vmatpush.bf16.msra.mxu0 0
        %408 = vmatpush.bf16.msra.mxu0 %v395
        %409 = vmatpush.bf16.msra.mxu0 %v394
        %410 = vmatmul.bf16.gmra.mxu0 %v400
        %v411 = vpop.f32.mrf.mxu0
        %v412 = vadd.f32 0.0, %v411
        %v413 = vpop.f32.mrf.mxu0
        %v414 = vadd.f32 0.0, %v413
        %415 = vdwg.mxu0
        %v420 = vunpack.c.l.b16 %v372
        %v421 = vunpack.c.l.b16 %v373
        %v422 = vunpack.c.l.b16 %v374
        %v423 = vunpack.c.l.b16 %v375
        %v424 = vpack.c.b16 %v421, %v420
        %v425 = vpack.c.b16 %v423, %v422
        %v429 = vsel %vm398, %v371, 0
        %431 = vmatpush.bf16.msra.mxu0 0
        %432 = vmatpush.bf16.msra.mxu0 0
        %433 = vmatpush.bf16.msra.mxu0 0
        %434 = vmatpush.bf16.msra.mxu0 0
        %435 = vmatpush.bf16.msra.mxu0 0
        %436 = vmatpush.bf16.msra.mxu0 0
        %437 = vmatpush.bf16.msra.mxu0 %v425
        %438 = vmatpush.bf16.msra.mxu0 %v424
        %439 = vmatmul.bf16.gmra.mxu0 %v429
        %v440 = vpop.f32.mrf.mxu0
        %v441 = vadd.f32 %v412, %v440
        %v442 = vpop.f32.mrf.mxu0
        %v443 = vadd.f32 %v414, %v442
        %444 = vdwg.mxu0
        %s445 = scalar_lea.vmem %s312, 4 [#allocation2]
        %v446 = vld [vmem:[%s445] ss:$4 sm:$0xff]
        %s447 = scalar_lea.vmem %s312, 44 [#allocation2]
        %v448 = vld [vmem:[%s447] ss:$4 sm:$0xff]
        %v449 = vpack.c.bf16 %v448, %v446
        %s450 = scalar_lea.vmem %s358, 32
        %v451 = vld [vmem:[%s450] sm:$0xf]
        %v452 = vld [vmem:[%s450 + $0x4] sm:$0xf]
        %v453 = vld [vmem:[%s450 + $0x8] sm:$0xf]
        %v454 = vld [vmem:[%s450 + $0xc] sm:$0xf]
        %v459 = vunpack.c.l.b16 %v451
        %v460 = vunpack.c.l.b16 %v452
        %v461 = vunpack.c.l.b16 %v453
        %v462 = vunpack.c.l.b16 %v454
        %v463 = vpack.c.b16 %v460, %v459
        %v464 = vpack.c.b16 %v462, %v461
        %v468 = vsel %vm398, %v449, 0
        %470 = vmatpush.bf16.msra.mxu0 0
        %471 = vmatpush.bf16.msra.mxu0 0
        %472 = vmatpush.bf16.msra.mxu0 0
        %473 = vmatpush.bf16.msra.mxu0 0
        %474 = vmatpush.bf16.msra.mxu0 0
        %475 = vmatpush.bf16.msra.mxu0 0
        %476 = vmatpush.bf16.msra.mxu0 %v464
        %477 = vmatpush.bf16.msra.mxu0 %v463
        %478 = vmatmul.bf16.gmra.mxu0 %v468
        %v479 = vpop.f32.mrf.mxu0
        %v480 = vadd.f32 0.0, %v479
        %v481 = vpop.f32.mrf.mxu0
        %v482 = vadd.f32 0.0, %v481
        %483 = vdwg.mxu0
        %v484 = vadd.f32 %v441, %v480
        %v485 = vadd.f32 %v443, %v482
        %s486 = scalar_lea.vmem %s312, 5 [#allocation2]
        %v487 = vld [vmem:[%s486] ss:$4 sm:$0xff]
        %s488 = scalar_lea.vmem %s312, 45 [#allocation2]
        %v489 = vld [vmem:[%s488] ss:$4 sm:$0xff]
        %v490 = vpack.c.bf16 %v489, %v487
        %s491 = scalar_lea.vmem %s358, 48
        %v492 = vld [vmem:[%s491] sm:$0xf]
        %v493 = vld [vmem:[%s491 + $0x4] sm:$0xf]
        %v494 = vld [vmem:[%s491 + $0x8] sm:$0xf]
        %v495 = vld [vmem:[%s491 + $0xc] sm:$0xf]
        %v500 = vunpack.c.l.b16 %v492
        %v501 = vunpack.c.l.b16 %v493
        %v502 = vunpack.c.l.b16 %v494
        %v503 = vunpack.c.l.b16 %v495
        %v504 = vpack.c.b16 %v501, %v500
        %v505 = vpack.c.b16 %v503, %v502
        %v509 = vsel %vm398, %v490, 0
        %511 = vmatpush.bf16.msra.mxu0 0
        %512 = vmatpush.bf16.msra.mxu0 0
        %513 = vmatpush.bf16.msra.mxu0 0
        %514 = vmatpush.bf16.msra.mxu0 0
        %515 = vmatpush.bf16.msra.mxu0 0
        %516 = vmatpush.bf16.msra.mxu0 0
        %517 = vmatpush.bf16.msra.mxu0 %v505
        %518 = vmatpush.bf16.msra.mxu0 %v504
        %519 = vmatmul.bf16.gmra.mxu0 %v509
        %v520 = vpop.f32.mrf.mxu0
        %v521 = vadd.f32 0.0, %v520
        %v522 = vpop.f32.mrf.mxu0
        %v523 = vadd.f32 0.0, %v522
        %524 = vdwg.mxu0
        %v525 = vadd.f32 %v484, %v521
        %v526 = vadd.f32 %v485, %v523
        %s527 = scalar_lea.vmem %s312, 6 [#allocation2]
        %v528 = vld [vmem:[%s527] ss:$4 sm:$0xff]
        %s529 = scalar_lea.vmem %s312, 46 [#allocation2]
        %v530 = vld [vmem:[%s529] ss:$4 sm:$0xff]
        %v531 = vpack.c.bf16 %v530, %v528
        %s532 = scalar_lea.vmem %s358, 64
        %v533 = vld [vmem:[%s532] sm:$0xf]
        %v534 = vld [vmem:[%s532 + $0x4] sm:$0xf]
        %v535 = vld [vmem:[%s532 + $0x8] sm:$0xf]
        %v536 = vld [vmem:[%s532 + $0xc] sm:$0xf]
        %v541 = vunpack.c.l.b16 %v533
        %v542 = vunpack.c.l.b16 %v534
        %v543 = vunpack.c.l.b16 %v535
        %v544 = vunpack.c.l.b16 %v536
        %v545 = vpack.c.b16 %v542, %v541
        %v546 = vpack.c.b16 %v544, %v543
        %v550 = vsel %vm398, %v531, 0
        %552 = vmatpush.bf16.msra.mxu0 0
        %553 = vmatpush.bf16.msra.mxu0 0
        %554 = vmatpush.bf16.msra.mxu0 0
        %555 = vmatpush.bf16.msra.mxu0 0
        %556 = vmatpush.bf16.msra.mxu0 0
        %557 = vmatpush.bf16.msra.mxu0 0
        %558 = vmatpush.bf16.msra.mxu0 %v546
        %559 = vmatpush.bf16.msra.mxu0 %v545
        %560 = vmatmul.bf16.gmra.mxu0 %v550
        %v561 = vpop.f32.mrf.mxu0
        %v562 = vadd.f32 0.0, %v561
        %v563 = vpop.f32.mrf.mxu0
        %v564 = vadd.f32 0.0, %v563
        %565 = vdwg.mxu0
        %v566 = vadd.f32 %v525, %v562
        %v567 = vadd.f32 %v526, %v564
        %s568 = scalar_lea.vmem %s312, 7 [#allocation2]
        %v569 = vld [vmem:[%s568] ss:$4 sm:$0xff]
        %s570 = scalar_lea.vmem %s312, 47 [#allocation2]
        %v571 = vld [vmem:[%s570] ss:$4 sm:$0xff]
        %v572 = vpack.c.bf16 %v571, %v569
        %s573 = scalar_lea.vmem %s358, 80
        %v574 = vld [vmem:[%s573] sm:$0xf]
        %v575 = vld [vmem:[%s573 + $0x4] sm:$0xf]
        %v576 = vld [vmem:[%s573 + $0x8] sm:$0xf]
        %v577 = vld [vmem:[%s573 + $0xc] sm:$0xf]
        %v582 = vunpack.c.l.b16 %v574
        %v583 = vunpack.c.l.b16 %v575
        %v584 = vunpack.c.l.b16 %v576
        %v585 = vunpack.c.l.b16 %v577
        %v586 = vpack.c.b16 %v583, %v582
        %v587 = vpack.c.b16 %v585, %v584
        %v591 = vsel %vm398, %v572, 0
        %593 = vmatpush.bf16.msra.mxu0 0
        %594 = vmatpush.bf16.msra.mxu0 0
        %595 = vmatpush.bf16.msra.mxu0 0
        %596 = vmatpush.bf16.msra.mxu0 0
        %597 = vmatpush.bf16.msra.mxu0 0
        %598 = vmatpush.bf16.msra.mxu0 0
        %599 = vmatpush.bf16.msra.mxu0 %v587
        %600 = vmatpush.bf16.msra.mxu0 %v586
        %601 = vmatmul.bf16.gmra.mxu0 %v591
        %v602 = vpop.f32.mrf.mxu0
        %v603 = vadd.f32 0.0, %v602
        %v604 = vpop.f32.mrf.mxu0
        %v605 = vadd.f32 0.0, %v604
        %606 = vdwg.mxu0
        %v607 = vadd.f32 %v566, %v603
        %v608 = vadd.f32 %v567, %v605
        %s609 = scalar_lea.vmem %s312, 8 [#allocation2]
        %v610 = vld [vmem:[%s609] ss:$4 sm:$0xff]
        %s611 = scalar_lea.vmem %s312, 48 [#allocation2]
        %v612 = vld [vmem:[%s611] ss:$4 sm:$0xff]
        %v613 = vpack.c.bf16 %v612, %v610
        %s614 = scalar_lea.vmem %s358, 96
        %v615 = vld [vmem:[%s614] sm:$0xf]
        %v616 = vld [vmem:[%s614 + $0x4] sm:$0xf]
        %v617 = vld [vmem:[%s614 + $0x8] sm:$0xf]
        %v618 = vld [vmem:[%s614 + $0xc] sm:$0xf]
        %v623 = vunpack.c.l.b16 %v615
        %v624 = vunpack.c.l.b16 %v616
        %v625 = vunpack.c.l.b16 %v617
        %v626 = vunpack.c.l.b16 %v618
        %v627 = vpack.c.b16 %v624, %v623
        %v628 = vpack.c.b16 %v626, %v625
        %v632 = vsel %vm398, %v613, 0
        %634 = vmatpush.bf16.msra.mxu0 0
        %635 = vmatpush.bf16.msra.mxu0 0
        %636 = vmatpush.bf16.msra.mxu0 0
        %637 = vmatpush.bf16.msra.mxu0 0
        %638 = vmatpush.bf16.msra.mxu0 0
        %639 = vmatpush.bf16.msra.mxu0 0
        %640 = vmatpush.bf16.msra.mxu0 %v628
        %641 = vmatpush.bf16.msra.mxu0 %v627
        %642 = vmatmul.bf16.gmra.mxu0 %v632
        %v643 = vpop.f32.mrf.mxu0
        %v644 = vadd.f32 0.0, %v643
        %v645 = vpop.f32.mrf.mxu0
        %v646 = vadd.f32 0.0, %v645
        %647 = vdwg.mxu0
        %v648 = vadd.f32 %v607, %v644
        %v649 = vadd.f32 %v608, %v646
        %v650 = vsub.f32 %v648, %v364
        %v651 = vsub.f32 %v649, %v365
        %v652 = vand.u32 2147483647, %v650
        %v653 = vand.u32 2147483647, %v651
        %v654 = vmul.f32 %v652, %v366
        %v655 = vmul.f32 %v653, %v366
        %v656 = vadd.f32 %v654, %v655
        %657 = vadd.xlane.f32.xlu0 %v656
        %v658 = vpop.xlane.xlu0 %657
        %v659 = vrot.slane %v658, 4
        %v660 = vadd.f32 %v658, %v659
        %v661 = vrot.slane %v660, 2
        %v662 = vadd.f32 %v660, %v661
        %v663 = vrot.slane %v662, 1
        %v664 = vadd.f32 %v662, %v663
        %s665 = vtos %v664
        %v666 = vstv %s665
        %667 = vst [vmem:[%s353] sm:$0x1] %v666
        %s668 = sand.u32 %s130, 1
        %s669 = scalar_lea.sflag [#allocation5], %s668
        %s670 = sand.u32 %s130, 1
        %s671 = scalar_lea.vmem [#allocation4], %s670
        // Predicated region
        $region113: #{tpu_custom_call.1} parent=103 // pred_check
          %p672 = pneg %p140
        $region114: #{tpu_custom_call.1} parent=103 // pred_check_branch
          %674 = sbr.rel (%p672) target = $region116
        $region115: #{tpu_custom_call.1} parent=103 // pred_region
          %676 = vsyncadd %s669, 0
          %s677 = scalar_lea.hbm %s4, %s18
          %s679 = sshll.u32 %s671, 4
          %s680 = int_to_ptr.vmem [resolvable:$true] %s679
          %s681 = sshll.u32 %s677, 4
          %s682 = int_to_ptr.hbm [resolvable:$true] %s681
          %684 = dma.vmem_to_hbm [thread:$0]  %s680, 16, %s682, %s669
        $region116: #{tpu_custom_call.1} parent=103 // pred_fallthru
          _
      $region104: #{tpu_custom_call.1} parent=5 // pred_fallthru
        _
      %p685 = scmp.le.s32.totalorder 2, %s13
      // Predicated region
      $region117: #{tpu_custom_call.1} parent=5 // pred_check
        %p686 = pneg %p685
      $region118: #{tpu_custom_call.1} parent=5 // pred_check_branch
        %688 = sbr.rel (%p686) target = $region120
      $region119: #{tpu_custom_call.1} parent=5 // pred_region
        %s689 = ssub.s32 %s13, 2
        // Predicated region
        $region121: #{tpu_custom_call.1} parent=119 // pred_check
          %p690 = pneg %p146
        $region122: #{tpu_custom_call.1} parent=119 // pred_check_branch
          %692 = sbr.rel (%p690) target = $region124
        $region123: #{tpu_custom_call.1} parent=119 // pred_region
          %s693 = sand.u32 %s131, 1
          %s694 = scalar_lea.sflag [#allocation5], %s693
          %s695 = sand.u32 %s131, 1
          %s696 = scalar_lea.vmem [#allocation4], %s695
          %698 = dma.done %s694, 16
        $region124: #{tpu_custom_call.1} parent=119 // pred_fallthru
          _
      $region120: #{tpu_custom_call.1} parent=5 // pred_fallthru
        _
    $region6: #{tpu_custom_call.1} parent=1 // loop_footer
      %s17 = sadd.s32 1, %s13
    $region7: #{tpu_custom_call.1} parent=1 // loop_footer_branch
      %12 = sbr.rel target = $region3
    $region8: #{tpu_custom_call.1} parent=1 // loop_exit
      _
    %699 = vsyncpa [#allocation5], 1
    %s700 = scalar_lea.sflag [#allocation5], 1
    %701 = vsyncpa %s700, 1

</llo_original>
